<compile_context>
chip_gen: v7x
topology: tpu7x:2x2x1
jax: 0.10.0
libtpu: 0.0.40
codegen_flags: <defaults>
</compile_context>

<pallas_src>
import functools
import math

import jax
import jax.numpy as jnp
from jax.experimental import pallas as pl
from jax.experimental.pallas import tpu as pltpu


_VMEM_LIMIT = 48 * 1024 * 1024  # safe on v5e/v6e (128 MiB) and v7x (64 MiB physical)


# ------------------------------- helpers ------------------------------------

def _round_up(x, m):
    return (x + m - 1) // m * m


def _pick_tile(dim, candidates):
    """Largest candidate that evenly divides `dim` (dim is already alignment-padded)."""
    for c in candidates:
        if c <= dim and dim % c == 0:
            return c
    return dim


# --------------------------- linear (single-step tiles) -----------------------

def _linear_kernel(x_ref, w_ref, b_ref, o_ref, *, act):
    """One (tm, tn) output tile, full-K contraction in a single MXU pass (f32 acc)."""
    y = jnp.dot(x_ref[...], w_ref[...], preferred_element_type=jnp.float32)
    y = y + b_ref[...].astype(jnp.float32)
    if act == "gelu":
        # TODO(synk): HF BERT uses erf-gelu; tanh-approx gelu is used here.
        y = jax.nn.gelu(y, approximate=True)
    elif act == "tanh":
        y = jnp.tanh(y)
    o_ref[...] = y.astype(o_ref.dtype)


def linear(x2d, w, b, act="none", out_dtype=jnp.bfloat16):
    """y = x @ W + b with W stored (in, out). bf16 MXU inputs, f32 accumulation."""
    M, K = x2d.shape
    Kw, N = w.shape
    assert K == Kw
    Mp, Kp, Np = _round_up(M, 8), _round_up(K, 128), _round_up(N, 128)
    tm = _pick_tile(Mp, (256, 128, 64, 32, 16, 8))
    # Collapse the N axis when the full (Kp, Np) bf16 weight panel is small (<= 8 MiB);
    # true for every matmul in this model, so each tile is a single grid step.
    if Kp * Np * 2 <= 8 * 1024 * 1024:
        tn = Np
    else:
        tn = _pick_tile(Np, (1024, 512, 256, 128))

    x_p = x2d.astype(jnp.bfloat16)
    if (Mp, Kp) != (M, K):
        x_p = jnp.pad(x_p, ((0, Mp - M), (0, Kp - K)))
    w_p = w.astype(jnp.bfloat16)
    if (Kp, Np) != (K, N):
        w_p = jnp.pad(w_p, ((0, Kp - K), (0, Np - N)))
    b_p = b.astype(jnp.float32).reshape(1, N)
    if Np != N:
        b_p = jnp.pad(b_p, ((0, 0), (0, Np - N)))

    out = pl.pallas_call(
        functools.partial(_linear_kernel, act=act),
        out_shape=jax.ShapeDtypeStruct((Mp, Np), out_dtype),
        grid_spec=pltpu.PrefetchScalarGridSpec(
            num_scalar_prefetch=0,
            grid=(Np // tn, Mp // tm),                       # M innermost: weight stays resident
            in_specs=[
                pl.BlockSpec((tm, Kp), lambda j, i: (i, 0)),
                pl.BlockSpec((Kp, tn), lambda j, i: (0, j)),
                pl.BlockSpec((1, tn), lambda j, i: (0, j)),
            ],
            out_specs=pl.BlockSpec((tm, tn), lambda j, i: (i, j)),
        ),
        compiler_params=pltpu.CompilerParams(
            dimension_semantics=("parallel", "parallel"),
            vmem_limit_bytes=_VMEM_LIMIT),
    )(x_p, w_p, b_p)

    if (Mp, Np) != (M, N):
        out = out[:M, :N]
    return out


# ------------------ linear + residual + LayerNorm fused ----------------------

def _linear_ln_kernel(x_ref, w_ref, b_ref, r_ref, g_ref, bb_ref, o_ref, *, eps, h_real):
    """LayerNorm((x @ W + b) + residual) on one (tm, Hp) row block, single MXU pass."""
    y = jnp.dot(x_ref[...], w_ref[...], preferred_element_type=jnp.float32)
    y = y + b_ref[...].astype(jnp.float32) + r_ref[...].astype(jnp.float32)
    # Padded lanes of y / gamma / beta are zero, so sums over the full lane width are
    # sums over the real H columns; divide by the real H.
    inv_h = 1.0 / h_real
    mu = jnp.sum(y, axis=-1, keepdims=True) * inv_h
    xc = y - mu
    if y.shape[-1] != h_real:                                  # mask padded lanes for variance
        lane = jax.lax.broadcasted_iota(jnp.int32, y.shape, dimension=1)
        xc = jnp.where(lane < h_real, xc, 0.0)
    var = jnp.sum(xc * xc, axis=-1, keepdims=True) * inv_h
    o_ref[...] = (xc * jax.lax.rsqrt(var + eps) * g_ref[...] + bb_ref[...]).astype(o_ref.dtype)


def linear_ln(x2d, w, b, residual, gamma, beta, eps=1e-12):
    """Fused: LayerNorm((x @ W + b) + residual).  Removes a standalone LN HBM round-trip."""
    M, K = x2d.shape
    Kw, H = w.shape
    assert K == Kw and residual.shape == (M, H)
    Mp, Kp, Hp = _round_up(M, 8), _round_up(K, 128), _round_up(H, 128)
    tm = _pick_tile(Mp, (256, 128, 64, 32, 16, 8))

    def pad2(a, r, c, dt):
        a = a.astype(dt)
        if a.shape != (r, c):
            a = jnp.pad(a, ((0, r - a.shape[0]), (0, c - a.shape[1])))
        return a

    x_p = pad2(x2d, Mp, Kp, jnp.bfloat16)
    w_p = pad2(w, Kp, Hp, jnp.bfloat16)
    r_p = pad2(residual, Mp, Hp, jnp.bfloat16)
    b_p = pad2(b.reshape(1, H), 1, Hp, jnp.float32)
    g_p = pad2(gamma.reshape(1, H), 1, Hp, jnp.float32)
    bb_p = pad2(beta.reshape(1, H), 1, Hp, jnp.float32)

    row_k = pl.BlockSpec((tm, Kp), lambda i: (i, 0))
    row_h = pl.BlockSpec((tm, Hp), lambda i: (i, 0))
    vec_h = pl.BlockSpec((1, Hp), lambda i: (0, 0))

    out = pl.pallas_call(
        functools.partial(_linear_ln_kernel, eps=eps, h_real=H),
        out_shape=jax.ShapeDtypeStruct((Mp, Hp), jnp.bfloat16),
        grid_spec=pltpu.PrefetchScalarGridSpec(
            num_scalar_prefetch=0,
            grid=(Mp // tm,),
            in_specs=[row_k,
                      pl.BlockSpec((Kp, Hp), lambda i: (0, 0)),
                      vec_h, row_h, vec_h, vec_h],
            out_specs=row_h,
        ),
        compiler_params=pltpu.CompilerParams(
            dimension_semantics=("parallel",),
            vmem_limit_bytes=_VMEM_LIMIT),
    )(x_p, w_p, b_p, r_p, g_p, bb_p)

    if (Mp, Hp) != (M, H):
        out = out[:M, :H]
    return out


# ------------------------ LayerNorm (embeddings only) -------------------------

def _ln_kernel(x_ref, g_ref, b_ref, o_ref, *, eps):
    x = x_ref[...].astype(jnp.float32)
    mu = jnp.mean(x, axis=-1, keepdims=True)
    xc = x - mu
    var = jnp.mean(xc * xc, axis=-1, keepdims=True)
    o_ref[...] = (xc * jax.lax.rsqrt(var + eps) * g_ref[...] + b_ref[...]).astype(o_ref.dtype)


def layernorm(x2d, gamma, beta, eps=1e-12):
    M, H = x2d.shape
    Mp = _round_up(M, 8)
    tm = _pick_tile(Mp, (512, 256, 128, 64, 32, 16, 8))
    x_p = x2d.astype(jnp.bfloat16)
    if Mp != M:
        x_p = jnp.pad(x_p, ((0, Mp - M), (0, 0)))
    g2 = gamma.astype(jnp.float32).reshape(1, H)
    b2 = beta.astype(jnp.float32).reshape(1, H)
    row = pl.BlockSpec((tm, H), lambda i: (i, 0))
    vec = pl.BlockSpec((1, H), lambda i: (0, 0))
    out = pl.pallas_call(
        functools.partial(_ln_kernel, eps=eps),
        out_shape=jax.ShapeDtypeStruct((Mp, H), jnp.bfloat16),
        grid_spec=pltpu.PrefetchScalarGridSpec(
            num_scalar_prefetch=0, grid=(Mp // tm,),
            in_specs=[row, vec, vec], out_specs=row),
        compiler_params=pltpu.CompilerParams(
            dimension_semantics=("parallel",),
            vmem_limit_bytes=_VMEM_LIMIT),
    )(x_p, g2, b2)
    if Mp != M:
        out = out[:M]
    return out


# ----------------------------- attention --------------------------------------

def _attn_kernel(q_ref, k_ref, v_ref, m_ref, o_ref, *, n_heads, dh):
    """All heads for one (batch, q-tile). Single-kv-step softmax (full S in VMEM)."""
    # TODO(synk): single-KV-step softmax assumes S <= ~1k (true for BERT); for longer
    # sequences the kv axis would need tiling + online softmax.
    q_all = q_ref[0]            # (tq, Hp) bf16, heads at lane offsets h*dh
    k_all = k_ref[0]            # (S,  Hp) bf16
    v_all = v_ref[0]            # (S,  Hp) bf16
    mask = m_ref[0]             # (1, S)  f32 additive padding mask
    outs = []
    for h in range(n_heads):    # static unroll over heads
        lo = h * dh
        q = q_all[:, lo:lo + dh]
        k = k_all[:, lo:lo + dh]
        v = v_all[:, lo:lo + dh]
        # 1/sqrt(dh) is pre-folded into the Q projection weights.
        s = jax.lax.dot_general(q, k, (((1,), (1,)), ((), ())),
                                preferred_element_type=jnp.float32)      # (tq, S)
        s = s + mask
        s = s - jnp.max(s, axis=-1, keepdims=True)
        p = jnp.exp(s)
        inv_l = pl.reciprocal(jnp.sum(p, axis=-1, keepdims=True), approx=True)
        ctx = jnp.dot(p.astype(v.dtype), v, preferred_element_type=jnp.float32)
        outs.append(ctx * inv_l)
    # Lane-dense (tq, H) store, heads-major -> directly usable by the output projection.
    o_ref[0] = jnp.concatenate(outs, axis=-1).astype(o_ref.dtype)


def attention(qkv_bs3, add_mask_b1s, n_heads, hidden):
    """qkv_bs3: [B, S, 3*Hp] fused QKV output ([Q|pad|K|pad|V|pad] lane sections).
    add_mask_b1s: [B, 1, S] additive mask. Returns [B, S, hidden] bf16."""
    B, S, three_hp = qkv_bs3.shape
    hp = three_hp // 3
    dh = hidden // n_heads
    tq = S if S <= 512 else _pick_tile(S, (512, 256, 128, 64, 32, 16, 8))

    return pl.pallas_call(
        functools.partial(_attn_kernel, n_heads=n_heads, dh=dh),
        out_shape=jax.ShapeDtypeStruct((B, S, hidden), jnp.bfloat16),
        grid_spec=pltpu.PrefetchScalarGridSpec(
            num_scalar_prefetch=0,
            grid=(B, S // tq),
            in_specs=[
                pl.BlockSpec((1, tq, hp), lambda b, qi: (b, qi, 0)),   # Q lane-section
                pl.BlockSpec((1, S, hp), lambda b, qi: (b, 0, 1)),     # K lane-section (full S)
                pl.BlockSpec((1, S, hp), lambda b, qi: (b, 0, 2)),     # V lane-section (full S)
                pl.BlockSpec((1, 1, S), lambda b, qi: (b, 0, 0)),      # additive pad mask
            ],
            out_specs=pl.BlockSpec((1, tq, hidden), lambda b, qi: (b, qi, 0)),
        ),
        compiler_params=pltpu.CompilerParams(
            dimension_semantics=("parallel", "parallel"),
            vmem_limit_bytes=_VMEM_LIMIT),
    )(qkv_bs3, qkv_bs3, qkv_bs3, add_mask_b1s.astype(jnp.float32))


# --------------------------- parameter construction --------------------------

def init_params(key, *, vocab, hidden, n_layers, n_heads, inter, max_pos, n_classes):
    dh = hidden // n_heads
    hp = _round_up(hidden, 128)
    q_scale = 1.0 / math.sqrt(dh)

    def nrm(k, shape, std=0.02):
        return (jax.random.normal(k, shape, dtype=jnp.float32) * std).astype(jnp.bfloat16)

    keys = jax.random.split(key, 8 + 8 * n_layers)
    ki = iter(keys)
    p = {
        "word_emb": nrm(next(ki), (vocab, hidden)),
        "pos_emb": nrm(next(ki), (max_pos, hidden)),
        "type_emb": nrm(next(ki), (2, hidden)),
        "emb_ln_g": jnp.ones((hidden,), jnp.float32),
        "emb_ln_b": jnp.zeros((hidden,), jnp.float32),
        "pool_w": nrm(next(ki), (hidden, hidden)),
        "pool_b": jnp.zeros((hidden,), jnp.float32),
        "out_w": nrm(next(ki), (hidden, n_classes)),   # nn.Linear(hidden, n_classes), stored (in, out)
        "out_b": jnp.zeros((n_classes,), jnp.float32),
        "n_heads": n_heads,
        "hidden": hidden,
        "layers": [],
    }
    for _ in range(n_layers):
        qw = nrm(next(ki), (hidden, hidden))
        kw = nrm(next(ki), (hidden, hidden))
        vw = nrm(next(ki), (hidden, hidden))
        # Fused QKV weight laid out as [Q | pad | K | pad | V | pad], each section lane-
        # padded to hp so attention() addresses Q/K/V via BlockSpec lane-block indices
        # (no XLA head-split transposes). 1/sqrt(dh) pre-folded into the Q section.
        qkv_w = jnp.zeros((hidden, 3 * hp), jnp.bfloat16)
        qkv_w = qkv_w.at[:, 0:hidden].set((qw.astype(jnp.float32) * q_scale).astype(jnp.bfloat16))
        qkv_w = qkv_w.at[:, hp:hp + hidden].set(kw)
        qkv_w = qkv_w.at[:, 2 * hp:2 * hp + hidden].set(vw)
        lp = {
            "qkv_w": qkv_w,
            "qkv_b": jnp.zeros((3 * hp,), jnp.float32),
            "ao_w": nrm(next(ki), (hidden, hidden)), "ao_b": jnp.zeros((hidden,), jnp.float32),
            "ln1_g": jnp.ones((hidden,), jnp.float32), "ln1_b": jnp.zeros((hidden,), jnp.float32),
            "fi_w": nrm(next(ki), (hidden, inter)), "fi_b": jnp.zeros((inter,), jnp.float32),
            "fo_w": nrm(next(ki), (inter, hidden)), "fo_b": jnp.zeros((hidden,), jnp.float32),
            "ln2_g": jnp.ones((hidden,), jnp.float32), "ln2_b": jnp.zeros((hidden,), jnp.float32),
        }
        p["layers"].append(lp)
    return p


# -------------------------------- forward pass --------------------------------

def encoder_layer(lp, x, add_mask, n_heads):
    B, S, H = x.shape
    x2 = x.reshape(B * S, H)

    # One fused QKV matmul; attention reads Q/K/V lane-sections straight out of its
    # [B, S, 3*Hp] output and writes a lane-dense [B, S, H] context slab.
    qkv = linear(x2, lp["qkv_w"], lp["qkv_b"])                          # [B*S, 3*Hp]
    ctx = attention(qkv.reshape(B, S, -1), add_mask, n_heads, H)        # [B, S, H]
    ctx = ctx.reshape(B * S, H)

    # attn output projection + residual + LayerNorm fused into one pallas_call
    x2 = linear_ln(ctx, lp["ao_w"], lp["ao_b"], x2, lp["ln1_g"], lp["ln1_b"])
    # FFN: gelu matmul, then output projection + residual + LayerNorm fused
    ff = linear(x2, lp["fi_w"], lp["fi_b"], act="gelu")
    x2 = linear_ln(ff, lp["fo_w"], lp["fo_b"], x2, lp["ln2_g"], lp["ln2_b"])
    return x2.reshape(B, S, H)


def sentiment_classifier_forward(params, input_ids, attention_mask):
    """Equivalent of SentimentClassifier.forward(input_ids, attention_mask) at eval time."""
    B, S = input_ids.shape
    H = params["hidden"]

    # --- BERT embeddings (data-dependent gather left to XLA; LayerNorm is Pallas) ---
    x = (params["word_emb"][input_ids]
         + params["pos_emb"][:S][None, :, :]
         + params["type_emb"][0][None, None, :])      # token_type_ids assumed all zero
    x = layernorm(x.reshape(B * S, H), params["emb_ln_g"], params["emb_ln_b"]).reshape(B, S, H)
    # embedding dropout: identity at inference

    # additive attention mask: 0 where attended, -10000 at padding, shaped [B, 1, S]
    add_mask = ((1.0 - attention_mask.astype(jnp.float32)) * -10000.0)[:, None, :]

    # --- BERT encoder layers ---
    for lp in params["layers"]:
        x = encoder_layer(lp, x, add_mask, params["n_heads"])

    # --- BERT pooler: tanh(W * CLS + b) ---
    pooled = linear(x[:, 0, :], params["pool_w"], params["pool_b"], act="tanh")       # [B, H]

    # --- self.drop(p=0.3): identity at inference (eval mode) ---
    # --- self.out: Linear(hidden, n_classes) ---
    logits = linear(pooled, params["out_w"], params["out_b"], out_dtype=jnp.float32)  # [B, n_classes]
    return logits


# ------------------------------------ main ------------------------------------

if __name__ == "__main__":
    B, S, H = 2, 8, 32
    N_LAYERS, N_HEADS, INTER = 2, 2, 64
    VOCAB, MAX_POS, N_CLASSES = 100, 16, 3

    key = jax.random.PRNGKey(0)
    kp, kid = jax.random.split(key)
    params = init_params(kp, vocab=VOCAB, hidden=H, n_layers=N_LAYERS,
                         n_heads=N_HEADS, inter=INTER, max_pos=MAX_POS,
                         n_classes=N_CLASSES)

    input_ids = jax.random.randint(kid, (B, S), 0, VOCAB, dtype=jnp.int32)
    # second sequence has two padded positions to exercise the attention mask
    attention_mask = jnp.array(
        [[1, 1, 1, 1, 1, 1, 1, 1],
         [1, 1, 1, 1, 1, 1, 0, 0]], dtype=jnp.int32)

    logits = sentiment_classifier_forward(params, input_ids, attention_mask)
    logits = jax.block_until_ready(logits)
    assert logits.shape == (B, N_CLASSES) and logits.dtype == jnp.float32
    assert bool(jnp.all(jnp.isfinite(logits)))
    print("KERNEL_OK")
</pallas_src>

<mosaic_0001>
module attributes {stable_mosaic.version = 11 : i64} {
  func.func @_ln_kernel(%arg0: i32, %arg1: memref<16x32xbf16, #tpu.memory_space<vmem>>, %arg2: memref<1x32xf32, #tpu.memory_space<vmem>>, %arg3: memref<1x32xf32, #tpu.memory_space<vmem>>, %arg4: memref<16x32xbf16, #tpu.memory_space<vmem>>) attributes {dimension_semantics = [#tpu.dimension_semantics<parallel>], iteration_bounds = array<i64: 1>, scalar_prefetch = 0 : i64, scratch_operands = 0 : i64, tpu.core_type = #tpu.core_type<tc>, window_params = [{transform_indices = @transform_0, window_bounds = array<i64: 16, 32>}, {pipeline_mode = #tpu.pipeline_mode<synchronous>, transform_indices = @transform_1, window_bounds = array<i64: 1, 32>}, {pipeline_mode = #tpu.pipeline_mode<synchronous>, transform_indices = @transform_2, window_bounds = array<i64: 1, 32>}, {transform_indices = @transform_3, window_bounds = array<i64: 16, 32>}]} {
    %c0 = arith.constant 0 : index
    %c0_0 = arith.constant 0 : index
    %0 = vector.load %arg1[%c0, %c0_0] : memref<16x32xbf16, #tpu.memory_space<vmem>>, vector<16x32xbf16>
    %1 = arith.extf %0 : vector<16x32xbf16> to vector<16x32xf32>
    %cst = arith.constant dense<0.000000e+00> : vector<16xf32>
    %2 = vector.multi_reduction <add>, %1, %cst [1] : vector<16x32xf32> to vector<16xf32>
    %3 = vector.shape_cast %2 : vector<16xf32> to vector<16x1xf32>
    %cst_1 = arith.constant 3.200000e+01 : f32
    %4 = vector.broadcast %cst_1 : f32 to vector<16x1xf32>
    %5 = arith.divf %3, %4 : vector<16x1xf32>
    %6 = vector.broadcast %5 : vector<16x1xf32> to vector<16x32xf32>
    %7 = arith.subf %1, %6 : vector<16x32xf32>
    %8 = arith.mulf %7, %7 : vector<16x32xf32>
    %cst_2 = arith.constant dense<0.000000e+00> : vector<16xf32>
    %9 = vector.multi_reduction <add>, %8, %cst_2 [1] : vector<16x32xf32> to vector<16xf32>
    %10 = vector.shape_cast %9 : vector<16xf32> to vector<16x1xf32>
    %cst_3 = arith.constant 3.200000e+01 : f32
    %11 = vector.broadcast %cst_3 : f32 to vector<16x1xf32>
    %12 = arith.divf %10, %11 : vector<16x1xf32>
    %cst_4 = arith.constant 9.99999996E-13 : f32
    %13 = vector.broadcast %cst_4 : f32 to vector<16x1xf32>
    %14 = arith.addf %12, %13 : vector<16x1xf32>
    %15 = math.rsqrt %14 : vector<16x1xf32>
    %16 = vector.broadcast %15 : vector<16x1xf32> to vector<16x32xf32>
    %17 = arith.mulf %7, %16 : vector<16x32xf32>
    %c0_5 = arith.constant 0 : index
    %c0_6 = arith.constant 0 : index
    %18 = vector.load %arg2[%c0_5, %c0_6] : memref<1x32xf32, #tpu.memory_space<vmem>>, vector<1x32xf32>
    %19 = vector.broadcast %18 : vector<1x32xf32> to vector<16x32xf32>
    %20 = arith.mulf %17, %19 : vector<16x32xf32>
    %c0_7 = arith.constant 0 : index
    %c0_8 = arith.constant 0 : index
    %21 = vector.load %arg3[%c0_7, %c0_8] : memref<1x32xf32, #tpu.memory_space<vmem>>, vector<1x32xf32>
    %22 = vector.broadcast %21 : vector<1x32xf32> to vector<16x32xf32>
    %23 = arith.addf %20, %22 : vector<16x32xf32>
    %24 = arith.truncf %23 : vector<16x32xf32> to vector<16x32xbf16>
    %c0_9 = arith.constant 0 : index
    %c0_10 = arith.constant 0 : index
    %25 = vector.load %arg4[%c0_9, %c0_10] : memref<16x32xbf16, #tpu.memory_space<vmem>>, vector<16x32xbf16>
    tpu.vector_store %arg4[%c0_9, %c0_10], %24 {strides = array<i32>} : memref<16x32xbf16, #tpu.memory_space<vmem>>, vector<16x32xbf16>,
    return
  }
  func.func @transform_0(%arg0: i32) -> (i32, i32) {
    %c0_i32 = arith.constant 0 : i32
    %c0_i32_0 = arith.constant 0 : i32
    return %arg0, %c0_i32 : i32, i32
  }
  func.func @transform_1(%arg0: i32) -> (i32, i32) {
    %c0_i32 = arith.constant 0 : i32
    %c0_i32_0 = arith.constant 0 : i32
    %c0_i32_1 = arith.constant 0 : i32
    return %c0_i32, %c0_i32_0 : i32, i32
  }
  func.func @transform_2(%arg0: i32) -> (i32, i32) {
    %c0_i32 = arith.constant 0 : i32
    %c0_i32_0 = arith.constant 0 : i32
    %c0_i32_1 = arith.constant 0 : i32
    return %c0_i32, %c0_i32_0 : i32, i32
  }
  func.func @transform_3(%arg0: i32) -> (i32, i32) {
    %c0_i32 = arith.constant 0 : i32
    %c0_i32_0 = arith.constant 0 : i32
    return %arg0, %c0_i32 : i32, i32
  }
}

</mosaic_0001>

<llo_original>
// kernel: tpu_custom_call.1
$region0: #{tpu_custom_call.1}
  #allocation0 [shape = 'u32[]', space=smem, size = 0x4, offset = 0x4, fixed_abs, tag = 'smem constant byte address 0x4 - core index']
  #allocation1 [shape = 'u32[144,128]{1,0:T(1,128)}', space=vmem, size = 0x12000, scoped, tag = 'internal scratch']
  %s0 = inlined_call_operand.hbm [shape: bf16[16,32], index: 0, kind: input, shape index: {}]
  %s1 = inlined_call_operand.vmem [shape: f32[1,32], index: 1, kind: input, shape index: {}]
  %s2 = inlined_call_operand.vmem [shape: f32[1,32], index: 2, kind: input, shape index: {}]
  %s3 = inlined_call_operand.hbm [shape: bf16[16,32], index: 3, kind: output, shape index: {}]
  %s4 = sld [smem:[#allocation0]]
  $region26: #{tpu_custom_call.1} parent=0
    _
  %s6 = ssub.s32 1, %s4
  %s7 = scalar_select 0, %s6, %s4
  $region1: #{tpu_custom_call.1} parent=0
    #allocation2 [shape = 'u8[4096]{0}', space=vmem, size = 0x1000, scoped, tag = 'input window, operand 0, single buffered']
    #allocation3 [shape = 's32[1]{0}', space=sflag, size = 0x4, scoped, tag = 'scoped memory for tpu_custom_call.1']
    #allocation4 [shape = 's32[1]{0}', space=sflag, size = 0x4, scoped, tag = 'scoped memory for tpu_custom_call.1']
    #allocation5 [shape = 'u8[4096]{0}', space=vmem, size = 0x1000, scoped, tag = 'output window, operand 0, single buffered']
    %8 = vsyncpa [#allocation3], 0
    %9 = vsyncpa [#allocation4], 0
    // Predicated region
    $region2: #{tpu_custom_call.1} parent=1 // pred_check
      _
    $region3: #{tpu_custom_call.1} parent=1 // pred_check_branch
      %11 = sbr.rel (0) target = $region5
    $region4: #{tpu_custom_call.1} parent=1 // pred_region
      %s13 = ssub.s32 128, 128
      %14 = vsyncadd [#allocation3], %s13
      %s15 = sshll.u32 [#allocation2], 4
      %s16 = int_to_ptr.vmem [resolvable:$true] %s15
      %21 = dma.hbm_to_vmem [thread:$0]  %s0, 128, %s16, [#allocation3], 64, 64, 4
    $region5: #{tpu_custom_call.1} parent=1 // pred_fallthru
      _
    // Predicated region
    $region6: #{tpu_custom_call.1} parent=1 // pred_check
      _
    $region7: #{tpu_custom_call.1} parent=1 // pred_check_branch
      %23 = sbr.rel (0) target = $region9
    $region8: #{tpu_custom_call.1} parent=1 // pred_region
      _
    $region9: #{tpu_custom_call.1} parent=1 // pred_fallthru
      _
    // Predicated region
    $region10: #{tpu_custom_call.1} parent=1 // pred_check
      _
    $region11: #{tpu_custom_call.1} parent=1 // pred_check_branch
      %25 = sbr.rel (0) target = $region13
    $region12: #{tpu_custom_call.1} parent=1 // pred_region
      _
    $region13: #{tpu_custom_call.1} parent=1 // pred_fallthru
      _
    // Predicated region
    $region14: #{tpu_custom_call.1} parent=1 // pred_check
      _
    $region15: #{tpu_custom_call.1} parent=1 // pred_check_branch
      %27 = sbr.rel (0) target = $region17
    $region16: #{tpu_custom_call.1} parent=1 // pred_region
      %28 = dma.done [#allocation3], 128
    $region17: #{tpu_custom_call.1} parent=1 // pred_fallthru
      _
    %v29 = vld [vmem:[#allocation2] sm:$0xf]
    %v30 = vld [vmem:[#allocation2 + $0x4] sm:$0xf]
    %v31 = vunpack.c.l.bf16 %v29
    %v32 = vunpack.c.l.bf16 %v30
    %vm33 = vcmask 261120
    %v34 = vsel %vm33, %v31, 0.0
    %35 = vadd.xlane.f32.xlu0 %v34
    %v36 = vpop.xlane.xlu0 %35
    %v37 = vsel %vm33, %v32, 0.0
    %38 = vadd.xlane.f32.xlu0 %v37
    %v39 = vpop.xlane.xlu0 %38
    %v40 = vrcp.pop 32.0
    %v41 = vmul.f32 %v36, %v40
    %v42 = vmul.f32 %v39, %v40
    %v43 = vsub.f32 %v31, %v41
    %v44 = vsub.f32 %v32, %v42
    %v45 = vmul.f32 %v43, %v43
    %v46 = vmul.f32 %v44, %v44
    %v47 = vsel %vm33, %v45, 0.0
    %48 = vadd.xlane.f32.xlu0 %v47
    %v49 = vpop.xlane.xlu0 %48
    %v50 = vsel %vm33, %v46, 0.0
    %51 = vadd.xlane.f32.xlu0 %v50
    %v52 = vpop.xlane.xlu0 %51
    %v53 = vmul.f32 %v49, %v40
    %v54 = vmul.f32 %v52, %v40
    %v55 = vadd.f32 %v53, 1e-12
    %v56 = vadd.f32 %v54, 1e-12
    %v57 = vrsqrt.pop %v55
    %v58 = vrsqrt.pop %v56
    %v59 = vmul.f32 %v43, %v57
    %v60 = vmul.f32 %v44, %v58
    %v61 = vld [vmem:[%s1] sm:$0x1]
    %v63 = vlaneseq
    %v64 = vshrl.u32 %v63, 7
    %v65 = vsub.s32 0, %v64
    %v66 = vrot.slane %v61, %v65
    %v68 = vmul.f32 %v59, %v66
    %v69 = vmul.f32 %v60, %v66
    %v70 = vld [vmem:[%s2] sm:$0x1]
    %v72 = vlaneseq
    %v73 = vshrl.u32 %v72, 7
    %v74 = vsub.s32 0, %v73
    %v75 = vrot.slane %v70, %v74
    %v77 = vadd.f32 %v68, %v75
    %v78 = vadd.f32 %v69, %v75
    %v79 = vpack.c.bf16 %v78, %v77
    %v81 = vunpack.c.l.b16 %v79
    %v82 = vunpack.c.h.b16 %v79
    %v83 = vpack.c.b16 %v81, %v81
    %v84 = vpack.c.b16 %v82, %v82
    %vm87 = vcmask 257024
    %88 = vst.msk [vmem:[#allocation5] sm:$0xf] %vm87, %v83
    %89 = vst.msk [vmem:[#allocation5 + $0x4] sm:$0xf] %vm87, %v84
    // Predicated region
    $region18: #{tpu_custom_call.1} parent=1 // pred_check
      _
    $region19: #{tpu_custom_call.1} parent=1 // pred_check_branch
      %91 = sbr.rel (0) target = $region21
    $region20: #{tpu_custom_call.1} parent=1 // pred_region
      %s93 = ssub.s32 128, 128
      %94 = vsyncadd [#allocation4], %s93
      %s95 = sshll.u32 [#allocation5], 4
      %s96 = int_to_ptr.vmem [resolvable:$true] %s95
      %101 = dma.vmem_to_hbm [thread:$0]  %s96, 128, %s3, [#allocation4], 64, 64, 4
    $region21: #{tpu_custom_call.1} parent=1 // pred_fallthru
      _
    // Predicated region
    $region22: #{tpu_custom_call.1} parent=1 // pred_check
      _
    $region23: #{tpu_custom_call.1} parent=1 // pred_check_branch
      %103 = sbr.rel (0) target = $region25
    $region24: #{tpu_custom_call.1} parent=1 // pred_region
      %104 = dma.done [#allocation4], 128
    $region25: #{tpu_custom_call.1} parent=1 // pred_fallthru
      _
    %105 = vsyncpa [#allocation3], 1
    %106 = vsyncpa [#allocation4], 1

</llo_original>
